<compile_context>
chip_gen: v7x
topology: tpu7x:2x2x1
jax: 0.10.0
libtpu: 0.0.40
codegen_flags: <defaults>
</compile_context>

<pallas_src>
import functools
import math

import jax
import jax.numpy as jnp
from jax.experimental import pallas as pl
from jax.experimental.pallas import tpu as pltpu


# ----------------------------- kernel ----------------------------------------


def _mapping_kernel(z_ref, w_ref, b_ref, out_ref, *, num_layers, act_alpha, eps):
    # z_ref:   [tb, D]        f32 latents (batch tile)
    # w_ref:   [L, D, D]      pre-transposed, pre-scaled (wg*sqrt(2)) bf16 weights, resident
    # b_ref:   [L, 1, D]      pre-scaled (bg*sqrt(2)) f32 biases, resident
    # out_ref: [tb, num_ws, D]
    x = z_ref[...].astype(jnp.float32)

    # normalize_2nd_moment over the feature (lane) axis.
    x = x * jax.lax.rsqrt(jnp.mean(x * x, axis=-1, keepdims=True) + eps)

    # Fused FC stack: bf16 x bf16 MXU matmul with f32 accumulation. All gains are
    # pre-folded into w_ref / b_ref, so the only VPU work is the lrelu max.
    for l in range(num_layers):
        t = jnp.dot(x.astype(w_ref.dtype), w_ref[l],
                    preferred_element_type=jnp.float32) + b_ref[l]
        x = jnp.maximum(t, act_alpha * t)   # lrelu; sqrt(2) gain already folded in

    # num_ws broadcast: per-slice lane-dense stores, no broadcast temp.
    xq = x.astype(out_ref.dtype)
    for j in range(out_ref.shape[1]):
        out_ref[:, j, :] = xq


# ----------------------------- wrapper ----------------------------------------


def _prepare_params(weights, biases, lr_multiplier, act_gain, weight_dtype):
    """weights: [L, out, in] (PyTorch layout) -> pre-transposed/pre-scaled params."""
    L, out_f, in_f = weights.shape
    weight_gain = lr_multiplier / math.sqrt(in_f)   # FullyConnectedLayer.weight_gain
    bias_gain = lr_multiplier                       # FullyConnectedLayer.bias_gain
    # Fold the post-activation sqrt(2) gain into each layer's own scales:
    # lrelu(g * (x@Wt + b)) == g * lrelu(x@Wt + b) for g > 0.
    w_t = (jnp.transpose(weights.astype(jnp.float32), (0, 2, 1))
           * (weight_gain * act_gain)).astype(weight_dtype)
    b2 = (biases.astype(jnp.float32) * (bias_gain * act_gain)).reshape(L, 1, out_f)
    return w_t, b2


def mapping_network_forward(z, weights, biases, *, num_ws,
                            lr_multiplier=0.01, act_alpha=0.2,
                            act_gain=math.sqrt(2.0), eps=1e-8,
                            batch_tile=None, weight_dtype=jnp.bfloat16,
                            out_dtype=jnp.float32):
    """z: [B, z_dim]; weights: [L, out_f, in_f] (PyTorch layout); biases: [L, out_f]."""
    B, z_dim = z.shape
    L, out_f, in_f = weights.shape
    assert in_f == z_dim and out_f == in_f, (
        "stacked-weight kernel assumes z_dim == w_dim == layer_features")

    w_t, b2 = _prepare_params(weights, biases, lr_multiplier, act_gain, weight_dtype)

    if batch_tile is None:
        # Large tiles amortize per-grid-step overhead and feed the MXU, but the
        # double-buffered [tb, num_ws, D] output block must stay comfortably under
        # v7x's 64 MiB VMEM -> budget ~16 MiB for it.
        out_bytes = jnp.dtype(out_dtype).itemsize
        cap = max(8, (16 << 20) // (2 * num_ws * out_f * out_bytes))
        tb = min(B, 512, int(cap))
        tb -= tb % 8                       # partial batch tiles need sublane-aligned rows
        if tb <= 0 or B % tb != 0:
            tb = B                         # small / awkward batches: single tile
    else:
        tb = batch_tile
    assert B % tb == 0, "batch must be divisible by the batch tile"

    kernel = functools.partial(
        _mapping_kernel, num_layers=L, act_alpha=act_alpha, eps=eps)

    return pl.pallas_call(
        kernel,
        out_shape=jax.ShapeDtypeStruct((B, num_ws, out_f), out_dtype),
        grid=(B // tb,),
        in_specs=[
            pl.BlockSpec((tb, z_dim), lambda i: (i, 0)),
            pl.BlockSpec((L, in_f, out_f), lambda i: (0, 0, 0)),  # resident across batch tiles
            pl.BlockSpec((L, 1, out_f), lambda i: (0, 0, 0)),
        ],
        out_specs=pl.BlockSpec((tb, num_ws, out_f), lambda i: (i, 0, 0)),
        compiler_params=pltpu.CompilerParams(dimension_semantics=("parallel",)),
    )(z.astype(jnp.float32), w_t, b2)


# ----------------------------- references (pure JAX) ---------------------------


def _reference_mapping(z, weights, biases, num_ws, lr_multiplier,
                       act_alpha=0.2, act_gain=math.sqrt(2.0), eps=1e-8):
    """Faithful f32 transcription of the PyTorch module (inference path)."""
    x = z.astype(jnp.float32)
    x = x * jax.lax.rsqrt(jnp.mean(jnp.square(x), axis=1, keepdims=True) + eps)
    L, out_f, in_f = weights.shape
    wg = lr_multiplier / math.sqrt(in_f)
    bg = lr_multiplier
    for l in range(L):
        w = weights[l].astype(jnp.float32) * wg
        b = biases[l].astype(jnp.float32) * bg
        t = jnp.dot(x, w.T, precision=jax.lax.Precision.HIGHEST) + b[None, :]
        x = jnp.where(t >= 0.0, t, act_alpha * t) * act_gain
    return jnp.broadcast_to(x[:, None, :], (x.shape[0], num_ws, x.shape[1]))


def _mirror_reference(z, w_t, b2, num_ws, act_alpha=0.2, eps=1e-8):
    """Pure-JAX mirror of the kernel numerics (same bf16 folded weights, f32 accum)."""
    x = z.astype(jnp.float32)
    x = x * jax.lax.rsqrt(jnp.mean(x * x, axis=-1, keepdims=True) + eps)
    L = w_t.shape[0]
    for l in range(L):
        t = jnp.dot(x.astype(w_t.dtype), w_t[l],
                    preferred_element_type=jnp.float32) + b2[l]
        x = jnp.maximum(t, act_alpha * t)
    return jnp.broadcast_to(x[:, None, :], (x.shape[0], num_ws, x.shape[1]))


# ----------------------------- main --------------------------------------------


if __name__ == "__main__":
    key = jax.random.PRNGKey(0)
    k_z, k_w, k_b = jax.random.split(key, 3)

    # Shapes consistent with MappingNetwork defaults:
    # z_dim = w_dim = layer_features = 128, num_layers = 8, num_ws = 8, batch = 8.
    batch_size = 8
    z_dim = w_dim = 128
    num_layers = 8
    num_ws = 8
    lr_multiplier = 0.01

    z = jax.random.normal(k_z, (batch_size, z_dim), jnp.float32)
    # PyTorch init: weight = randn([out, in]) / lr_multiplier.  Biases drawn randomly
    # (instead of bias_init=0) purely to exercise the bias_gain path.
    weights = jax.random.normal(k_w, (num_layers, w_dim, z_dim), jnp.float32) / lr_multiplier
    biases = jax.random.normal(k_b, (num_layers, w_dim), jnp.float32)

    out = mapping_network_forward(z, weights, biases, num_ws=num_ws,
                                  lr_multiplier=lr_multiplier)
    out = jax.block_until_ready(out)
    assert out.shape == (batch_size, num_ws, w_dim), out.shape

    # Tight check: kernel vs a pure-JAX mirror using the exact same bf16 folded params.
    w_t, b2 = _prepare_params(weights, biases, lr_multiplier, math.sqrt(2.0), jnp.bfloat16)
    mirror = jax.block_until_ready(_mirror_reference(z, w_t, b2, num_ws))
    assert jnp.allclose(out, mirror, rtol=5e-3, atol=5e-3), (
        f"mirror mismatch: max abs err {jnp.max(jnp.abs(out - mirror))}")

    # Loose semantic check vs the full-precision module reference
    # (difference is bounded bf16 weight/activation quantization error only).
    ref = jax.block_until_ready(
        _reference_mapping(z, weights, biases, num_ws, lr_multiplier))
    max_err = jnp.max(jnp.abs(out - ref))
    assert max_err < 0.15, f"semantic mismatch vs f32 reference: max abs err {max_err}"

    print("KERNEL_OK")
</pallas_src>

<mosaic_0001>
module attributes {stable_mosaic.version = 11 : i64} {
  func.func @_mapping_kernel(%arg0: i32, %arg1: memref<8x128xf32, #tpu.memory_space<vmem>>, %arg2: memref<8x128x128xbf16, #tpu.memory_space<vmem>>, %arg3: memref<8x1x128xf32, #tpu.memory_space<vmem>>, %arg4: memref<8x8x128xf32, #tpu.memory_space<vmem>>) attributes {dimension_semantics = [#tpu.dimension_semantics<parallel>], iteration_bounds = array<i64: 1>, scalar_prefetch = 0 : i64, scratch_operands = 0 : i64, tpu.core_type = #tpu.core_type<tc>, window_params = [{transform_indices = @transform_0, window_bounds = array<i64: 8, 128>}, {pipeline_mode = #tpu.pipeline_mode<synchronous>, transform_indices = @transform_1, window_bounds = array<i64: 8, 128, 128>}, {pipeline_mode = #tpu.pipeline_mode<synchronous>, transform_indices = @transform_2, window_bounds = array<i64: 8, 1, 128>}, {transform_indices = @transform_3, window_bounds = array<i64: 8, 8, 128>}]} {
    %c0 = arith.constant 0 : index
    %c0_0 = arith.constant 0 : index
    %0 = vector.load %arg1[%c0, %c0_0] : memref<8x128xf32, #tpu.memory_space<vmem>>, vector<8x128xf32>
    %1 = arith.mulf %0, %0 : vector<8x128xf32>
    %cst = arith.constant dense<0.000000e+00> : vector<8xf32>
    %2 = vector.multi_reduction <add>, %1, %cst [1] : vector<8x128xf32> to vector<8xf32>
    %3 = vector.shape_cast %2 : vector<8xf32> to vector<8x1xf32>
    %cst_1 = arith.constant 1.280000e+02 : f32
    %4 = vector.broadcast %cst_1 : f32 to vector<8x1xf32>
    %5 = arith.divf %3, %4 : vector<8x1xf32>
    %cst_2 = arith.constant 9.99999993E-9 : f32
    %6 = vector.broadcast %cst_2 : f32 to vector<8x1xf32>
    %7 = arith.addf %5, %6 : vector<8x1xf32>
    %8 = math.rsqrt %7 : vector<8x1xf32>
    %9 = vector.broadcast %8 : vector<8x1xf32> to vector<8x128xf32>
    %10 = arith.mulf %0, %9 : vector<8x128xf32>
    %11 = arith.truncf %10 : vector<8x128xf32> to vector<8x128xbf16>
    %c0_3 = arith.constant 0 : index
    %c0_4 = arith.constant 0 : index
    %c0_5 = arith.constant 0 : index
    %12 = vector.load %arg2[%c0_3, %c0_4, %c0_5] : memref<8x128x128xbf16, #tpu.memory_space<vmem>>, vector<1x128x128xbf16>
    %13 = vector.shape_cast %12 : vector<1x128x128xbf16> to vector<128x128xbf16>
    %cst_6 = arith.constant dense<0.000000e+00> : vector<8x128xf32>
    %14 = tpu.matmul %11, %13, %cst_6 {dimension_numbers = #tpu.dot_dimension_numbers<[1], [0], [0], [1], [0, 0, 1, 1], [], []>} : vector<8x128xbf16>, vector<128x128xbf16>, vector<8x128xf32> -> vector<8x128xf32>
    %c0_7 = arith.constant 0 : index
    %c0_8 = arith.constant 0 : index
    %c0_9 = arith.constant 0 : index
    %15 = vector.load %arg3[%c0_7, %c0_8, %c0_9] : memref<8x1x128xf32, #tpu.memory_space<vmem>>, vector<1x1x128xf32>
    %16 = vector.shape_cast %15 : vector<1x1x128xf32> to vector<1x128xf32>
    %17 = vector.broadcast %16 : vector<1x128xf32> to vector<8x128xf32>
    %18 = arith.addf %14, %17 : vector<8x128xf32>
    %cst_10 = arith.constant 2.000000e-01 : f32
    %19 = vector.broadcast %cst_10 : f32 to vector<8x128xf32>
    %20 = arith.mulf %19, %18 : vector<8x128xf32>
    %21 = arith.maximumf %18, %20 : vector<8x128xf32>
    %22 = arith.truncf %21 : vector<8x128xf32> to vector<8x128xbf16>
    %c1 = arith.constant 1 : index
    %c0_11 = arith.constant 0 : index
    %c0_12 = arith.constant 0 : index
    %23 = vector.load %arg2[%c1, %c0_11, %c0_12] : memref<8x128x128xbf16, #tpu.memory_space<vmem>>, vector<1x128x128xbf16>
    %24 = vector.shape_cast %23 : vector<1x128x128xbf16> to vector<128x128xbf16>
    %cst_13 = arith.constant dense<0.000000e+00> : vector<8x128xf32>
    %25 = tpu.matmul %22, %24, %cst_13 {dimension_numbers = #tpu.dot_dimension_numbers<[1], [0], [0], [1], [0, 0, 1, 1], [], []>} : vector<8x128xbf16>, vector<128x128xbf16>, vector<8x128xf32> -> vector<8x128xf32>
    %c1_14 = arith.constant 1 : index
    %c0_15 = arith.constant 0 : index
    %c0_16 = arith.constant 0 : index
    %26 = vector.load %arg3[%c1_14, %c0_15, %c0_16] : memref<8x1x128xf32, #tpu.memory_space<vmem>>, vector<1x1x128xf32>
    %27 = vector.shape_cast %26 : vector<1x1x128xf32> to vector<1x128xf32>
    %28 = vector.broadcast %27 : vector<1x128xf32> to vector<8x128xf32>
    %29 = arith.addf %25, %28 : vector<8x128xf32>
    %cst_17 = arith.constant 2.000000e-01 : f32
    %30 = vector.broadcast %cst_17 : f32 to vector<8x128xf32>
    %31 = arith.mulf %30, %29 : vector<8x128xf32>
    %32 = arith.maximumf %29, %31 : vector<8x128xf32>
    %33 = arith.truncf %32 : vector<8x128xf32> to vector<8x128xbf16>
    %c2 = arith.constant 2 : index
    %c0_18 = arith.constant 0 : index
    %c0_19 = arith.constant 0 : index
    %34 = vector.load %arg2[%c2, %c0_18, %c0_19] : memref<8x128x128xbf16, #tpu.memory_space<vmem>>, vector<1x128x128xbf16>
    %35 = vector.shape_cast %34 : vector<1x128x128xbf16> to vector<128x128xbf16>
    %cst_20 = arith.constant dense<0.000000e+00> : vector<8x128xf32>
    %36 = tpu.matmul %33, %35, %cst_20 {dimension_numbers = #tpu.dot_dimension_numbers<[1], [0], [0], [1], [0, 0, 1, 1], [], []>} : vector<8x128xbf16>, vector<128x128xbf16>, vector<8x128xf32> -> vector<8x128xf32>
    %c2_21 = arith.constant 2 : index
    %c0_22 = arith.constant 0 : index
    %c0_23 = arith.constant 0 : index
    %37 = vector.load %arg3[%c2_21, %c0_22, %c0_23] : memref<8x1x128xf32, #tpu.memory_space<vmem>>, vector<1x1x128xf32>
    %38 = vector.shape_cast %37 : vector<1x1x128xf32> to vector<1x128xf32>
    %39 = vector.broadcast %38 : vector<1x128xf32> to vector<8x128xf32>
    %40 = arith.addf %36, %39 : vector<8x128xf32>
    %cst_24 = arith.constant 2.000000e-01 : f32
    %41 = vector.broadcast %cst_24 : f32 to vector<8x128xf32>
    %42 = arith.mulf %41, %40 : vector<8x128xf32>
    %43 = arith.maximumf %40, %42 : vector<8x128xf32>
    %44 = arith.truncf %43 : vector<8x128xf32> to vector<8x128xbf16>
    %c3 = arith.constant 3 : index
    %c0_25 = arith.constant 0 : index
    %c0_26 = arith.constant 0 : index
    %45 = vector.load %arg2[%c3, %c0_25, %c0_26] : memref<8x128x128xbf16, #tpu.memory_space<vmem>>, vector<1x128x128xbf16>
    %46 = vector.shape_cast %45 : vector<1x128x128xbf16> to vector<128x128xbf16>
    %cst_27 = arith.constant dense<0.000000e+00> : vector<8x128xf32>
    %47 = tpu.matmul %44, %46, %cst_27 {dimension_numbers = #tpu.dot_dimension_numbers<[1], [0], [0], [1], [0, 0, 1, 1], [], []>} : vector<8x128xbf16>, vector<128x128xbf16>, vector<8x128xf32> -> vector<8x128xf32>
    %c3_28 = arith.constant 3 : index
    %c0_29 = arith.constant 0 : index
    %c0_30 = arith.constant 0 : index
    %48 = vector.load %arg3[%c3_28, %c0_29, %c0_30] : memref<8x1x128xf32, #tpu.memory_space<vmem>>, vector<1x1x128xf32>
    %49 = vector.shape_cast %48 : vector<1x1x128xf32> to vector<1x128xf32>
    %50 = vector.broadcast %49 : vector<1x128xf32> to vector<8x128xf32>
    %51 = arith.addf %47, %50 : vector<8x128xf32>
    %cst_31 = arith.constant 2.000000e-01 : f32
    %52 = vector.broadcast %cst_31 : f32 to vector<8x128xf32>
    %53 = arith.mulf %52, %51 : vector<8x128xf32>
    %54 = arith.maximumf %51, %53 : vector<8x128xf32>
    %55 = arith.truncf %54 : vector<8x128xf32> to vector<8x128xbf16>
    %c4 = arith.constant 4 : index
    %c0_32 = arith.constant 0 : index
    %c0_33 = arith.constant 0 : index
    %56 = vector.load %arg2[%c4, %c0_32, %c0_33] : memref<8x128x128xbf16, #tpu.memory_space<vmem>>, vector<1x128x128xbf16>
    %57 = vector.shape_cast %56 : vector<1x128x128xbf16> to vector<128x128xbf16>
    %cst_34 = arith.constant dense<0.000000e+00> : vector<8x128xf32>
    %58 = tpu.matmul %55, %57, %cst_34 {dimension_numbers = #tpu.dot_dimension_numbers<[1], [0], [0], [1], [0, 0, 1, 1], [], []>} : vector<8x128xbf16>, vector<128x128xbf16>, vector<8x128xf32> -> vector<8x128xf32>
    %c4_35 = arith.constant 4 : index
    %c0_36 = arith.constant 0 : index
    %c0_37 = arith.constant 0 : index
    %59 = vector.load %arg3[%c4_35, %c0_36, %c0_37] : memref<8x1x128xf32, #tpu.memory_space<vmem>>, vector<1x1x128xf32>
    %60 = vector.shape_cast %59 : vector<1x1x128xf32> to vector<1x128xf32>
    %61 = vector.broadcast %60 : vector<1x128xf32> to vector<8x128xf32>
    %62 = arith.addf %58, %61 : vector<8x128xf32>
    %cst_38 = arith.constant 2.000000e-01 : f32
    %63 = vector.broadcast %cst_38 : f32 to vector<8x128xf32>
    %64 = arith.mulf %63, %62 : vector<8x128xf32>
    %65 = arith.maximumf %62, %64 : vector<8x128xf32>
    %66 = arith.truncf %65 : vector<8x128xf32> to vector<8x128xbf16>
    %c5 = arith.constant 5 : index
    %c0_39 = arith.constant 0 : index
    %c0_40 = arith.constant 0 : index
    %67 = vector.load %arg2[%c5, %c0_39, %c0_40] : memref<8x128x128xbf16, #tpu.memory_space<vmem>>, vector<1x128x128xbf16>
    %68 = vector.shape_cast %67 : vector<1x128x128xbf16> to vector<128x128xbf16>
    %cst_41 = arith.constant dense<0.000000e+00> : vector<8x128xf32>
    %69 = tpu.matmul %66, %68, %cst_41 {dimension_numbers = #tpu.dot_dimension_numbers<[1], [0], [0], [1], [0, 0, 1, 1], [], []>} : vector<8x128xbf16>, vector<128x128xbf16>, vector<8x128xf32> -> vector<8x128xf32>
    %c5_42 = arith.constant 5 : index
    %c0_43 = arith.constant 0 : index
    %c0_44 = arith.constant 0 : index
    %70 = vector.load %arg3[%c5_42, %c0_43, %c0_44] : memref<8x1x128xf32, #tpu.memory_space<vmem>>, vector<1x1x128xf32>
    %71 = vector.shape_cast %70 : vector<1x1x128xf32> to vector<1x128xf32>
    %72 = vector.broadcast %71 : vector<1x128xf32> to vector<8x128xf32>
    %73 = arith.addf %69, %72 : vector<8x128xf32>
    %cst_45 = arith.constant 2.000000e-01 : f32
    %74 = vector.broadcast %cst_45 : f32 to vector<8x128xf32>
    %75 = arith.mulf %74, %73 : vector<8x128xf32>
    %76 = arith.maximumf %73, %75 : vector<8x128xf32>
    %77 = arith.truncf %76 : vector<8x128xf32> to vector<8x128xbf16>
    %c6 = arith.constant 6 : index
    %c0_46 = arith.constant 0 : index
    %c0_47 = arith.constant 0 : index
    %78 = vector.load %arg2[%c6, %c0_46, %c0_47] : memref<8x128x128xbf16, #tpu.memory_space<vmem>>, vector<1x128x128xbf16>
    %79 = vector.shape_cast %78 : vector<1x128x128xbf16> to vector<128x128xbf16>
    %cst_48 = arith.constant dense<0.000000e+00> : vector<8x128xf32>
    %80 = tpu.matmul %77, %79, %cst_48 {dimension_numbers = #tpu.dot_dimension_numbers<[1], [0], [0], [1], [0, 0, 1, 1], [], []>} : vector<8x128xbf16>, vector<128x128xbf16>, vector<8x128xf32> -> vector<8x128xf32>
    %c6_49 = arith.constant 6 : index
    %c0_50 = arith.constant 0 : index
    %c0_51 = arith.constant 0 : index
    %81 = vector.load %arg3[%c6_49, %c0_50, %c0_51] : memref<8x1x128xf32, #tpu.memory_space<vmem>>, vector<1x1x128xf32>
    %82 = vector.shape_cast %81 : vector<1x1x128xf32> to vector<1x128xf32>
    %83 = vector.broadcast %82 : vector<1x128xf32> to vector<8x128xf32>
    %84 = arith.addf %80, %83 : vector<8x128xf32>
    %cst_52 = arith.constant 2.000000e-01 : f32
    %85 = vector.broadcast %cst_52 : f32 to vector<8x128xf32>
    %86 = arith.mulf %85, %84 : vector<8x128xf32>
    %87 = arith.maximumf %84, %86 : vector<8x128xf32>
    %88 = arith.truncf %87 : vector<8x128xf32> to vector<8x128xbf16>
    %c7 = arith.constant 7 : index
    %c0_53 = arith.constant 0 : index
    %c0_54 = arith.constant 0 : index
    %89 = vector.load %arg2[%c7, %c0_53, %c0_54] : memref<8x128x128xbf16, #tpu.memory_space<vmem>>, vector<1x128x128xbf16>
    %90 = vector.shape_cast %89 : vector<1x128x128xbf16> to vector<128x128xbf16>
    %cst_55 = arith.constant dense<0.000000e+00> : vector<8x128xf32>
    %91 = tpu.matmul %88, %90, %cst_55 {dimension_numbers = #tpu.dot_dimension_numbers<[1], [0], [0], [1], [0, 0, 1, 1], [], []>} : vector<8x128xbf16>, vector<128x128xbf16>, vector<8x128xf32> -> vector<8x128xf32>
    %c7_56 = arith.constant 7 : index
    %c0_57 = arith.constant 0 : index
    %c0_58 = arith.constant 0 : index
    %92 = vector.load %arg3[%c7_56, %c0_57, %c0_58] : memref<8x1x128xf32, #tpu.memory_space<vmem>>, vector<1x1x128xf32>
    %93 = vector.shape_cast %92 : vector<1x1x128xf32> to vector<1x128xf32>
    %94 = vector.broadcast %93 : vector<1x128xf32> to vector<8x128xf32>
    %95 = arith.addf %91, %94 : vector<8x128xf32>
    %cst_59 = arith.constant 2.000000e-01 : f32
    %96 = vector.broadcast %cst_59 : f32 to vector<8x128xf32>
    %97 = arith.mulf %96, %95 : vector<8x128xf32>
    %98 = arith.maximumf %95, %97 : vector<8x128xf32>
    %c0_60 = arith.constant 0 : index
    %c0_61 = arith.constant 0 : index
    %c0_62 = arith.constant 0 : index
    %99 = vector.load %arg4[%c0_60, %c0_61, %c0_62] : memref<8x8x128xf32, #tpu.memory_space<vmem>>, vector<8x1x128xf32>
    %100 = vector.shape_cast %99 : vector<8x1x128xf32> to vector<8x128xf32>
    %101 = vector.shape_cast %98 : vector<8x128xf32> to vector<8x1x128xf32>
    tpu.vector_store %arg4[%c0_60, %c0_61, %c0_62], %101 {strides = array<i32>} : memref<8x8x128xf32, #tpu.memory_space<vmem>>, vector<8x1x128xf32>,
    %c0_63 = arith.constant 0 : index
    %c1_64 = arith.constant 1 : index
    %c0_65 = arith.constant 0 : index
    %102 = vector.load %arg4[%c0_63, %c1_64, %c0_65] : memref<8x8x128xf32, #tpu.memory_space<vmem>>, vector<8x1x128xf32>
    %103 = vector.shape_cast %102 : vector<8x1x128xf32> to vector<8x128xf32>
    %104 = vector.shape_cast %98 : vector<8x128xf32> to vector<8x1x128xf32>
    tpu.vector_store %arg4[%c0_63, %c1_64, %c0_65], %104 {strides = array<i32>} : memref<8x8x128xf32, #tpu.memory_space<vmem>>, vector<8x1x128xf32>,
    %c0_66 = arith.constant 0 : index
    %c2_67 = arith.constant 2 : index
    %c0_68 = arith.constant 0 : index
    %105 = vector.load %arg4[%c0_66, %c2_67, %c0_68] : memref<8x8x128xf32, #tpu.memory_space<vmem>>, vector<8x1x128xf32>
    %106 = vector.shape_cast %105 : vector<8x1x128xf32> to vector<8x128xf32>
    %107 = vector.shape_cast %98 : vector<8x128xf32> to vector<8x1x128xf32>
    tpu.vector_store %arg4[%c0_66, %c2_67, %c0_68], %107 {strides = array<i32>} : memref<8x8x128xf32, #tpu.memory_space<vmem>>, vector<8x1x128xf32>,
    %c0_69 = arith.constant 0 : index
    %c3_70 = arith.constant 3 : index
    %c0_71 = arith.constant 0 : index
    %108 = vector.load %arg4[%c0_69, %c3_70, %c0_71] : memref<8x8x128xf32, #tpu.memory_space<vmem>>, vector<8x1x128xf32>
    %109 = vector.shape_cast %108 : vector<8x1x128xf32> to vector<8x128xf32>
    %110 = vector.shape_cast %98 : vector<8x128xf32> to vector<8x1x128xf32>
    tpu.vector_store %arg4[%c0_69, %c3_70, %c0_71], %110 {strides = array<i32>} : memref<8x8x128xf32, #tpu.memory_space<vmem>>, vector<8x1x128xf32>,
    %c0_72 = arith.constant 0 : index
    %c4_73 = arith.constant 4 : index
    %c0_74 = arith.constant 0 : index
    %111 = vector.load %arg4[%c0_72, %c4_73, %c0_74] : memref<8x8x128xf32, #tpu.memory_space<vmem>>, vector<8x1x128xf32>
    %112 = vector.shape_cast %111 : vector<8x1x128xf32> to vector<8x128xf32>
    %113 = vector.shape_cast %98 : vector<8x128xf32> to vector<8x1x128xf32>
    tpu.vector_store %arg4[%c0_72, %c4_73, %c0_74], %113 {strides = array<i32>} : memref<8x8x128xf32, #tpu.memory_space<vmem>>, vector<8x1x128xf32>,
    %c0_75 = arith.constant 0 : index
    %c5_76 = arith.constant 5 : index
    %c0_77 = arith.constant 0 : index
    %114 = vector.load %arg4[%c0_75, %c5_76, %c0_77] : memref<8x8x128xf32, #tpu.memory_space<vmem>>, vector<8x1x128xf32>
    %115 = vector.shape_cast %114 : vector<8x1x128xf32> to vector<8x128xf32>
    %116 = vector.shape_cast %98 : vector<8x128xf32> to vector<8x1x128xf32>
    tpu.vector_store %arg4[%c0_75, %c5_76, %c0_77], %116 {strides = array<i32>} : memref<8x8x128xf32, #tpu.memory_space<vmem>>, vector<8x1x128xf32>,
    %c0_78 = arith.constant 0 : index
    %c6_79 = arith.constant 6 : index
    %c0_80 = arith.constant 0 : index
    %117 = vector.load %arg4[%c0_78, %c6_79, %c0_80] : memref<8x8x128xf32, #tpu.memory_space<vmem>>, vector<8x1x128xf32>
    %118 = vector.shape_cast %117 : vector<8x1x128xf32> to vector<8x128xf32>
    %119 = vector.shape_cast %98 : vector<8x128xf32> to vector<8x1x128xf32>
    tpu.vector_store %arg4[%c0_78, %c6_79, %c0_80], %119 {strides = array<i32>} : memref<8x8x128xf32, #tpu.memory_space<vmem>>, vector<8x1x128xf32>,
    %c0_81 = arith.constant 0 : index
    %c7_82 = arith.constant 7 : index
    %c0_83 = arith.constant 0 : index
    %120 = vector.load %arg4[%c0_81, %c7_82, %c0_83] : memref<8x8x128xf32, #tpu.memory_space<vmem>>, vector<8x1x128xf32>
    %121 = vector.shape_cast %120 : vector<8x1x128xf32> to vector<8x128xf32>
    %122 = vector.shape_cast %98 : vector<8x128xf32> to vector<8x1x128xf32>
    tpu.vector_store %arg4[%c0_81, %c7_82, %c0_83], %122 {strides = array<i32>} : memref<8x8x128xf32, #tpu.memory_space<vmem>>, vector<8x1x128xf32>,
    return
  }
  func.func @transform_0(%arg0: i32) -> (i32, i32) {
    %c0_i32 = arith.constant 0 : i32
    %c0_i32_0 = arith.constant 0 : i32
    return %arg0, %c0_i32 : i32, i32
  }
  func.func @transform_1(%arg0: i32) -> (i32, i32, i32) {
    %c0_i32 = arith.constant 0 : i32
    %c0_i32_0 = arith.constant 0 : i32
    %c0_i32_1 = arith.constant 0 : i32
    %c0_i32_2 = arith.constant 0 : i32
    return %c0_i32, %c0_i32_0, %c0_i32_1 : i32, i32, i32
  }
  func.func @transform_2(%arg0: i32) -> (i32, i32, i32) {
    %c0_i32 = arith.constant 0 : i32
    %c0_i32_0 = arith.constant 0 : i32
    %c0_i32_1 = arith.constant 0 : i32
    %c0_i32_2 = arith.constant 0 : i32
    return %c0_i32, %c0_i32_0, %c0_i32_1 : i32, i32, i32
  }
  func.func @transform_3(%arg0: i32) -> (i32, i32, i32) {
    %c0_i32 = arith.constant 0 : i32
    %c0_i32_0 = arith.constant 0 : i32
    %c0_i32_1 = arith.constant 0 : i32
    return %arg0, %c0_i32, %c0_i32_0 : i32, i32, i32
  }
}

</mosaic_0001>

<llo_original>
// kernel: tpu_custom_call.1
$region0: #{tpu_custom_call.1}
  #allocation0 [shape = 'u32[]', space=smem, size = 0x4, offset = 0x4, fixed_abs, tag = 'smem constant byte address 0x4 - core index']
  #allocation1 [shape = 'u32[144,128]{1,0:T(1,128)}', space=vmem, size = 0x12000, scoped, tag = 'internal scratch']
  %s0 = inlined_call_operand.hbm [shape: f32[8,128], index: 0, kind: input, shape index: {}]
  %s1 = inlined_call_operand.hbm [shape: bf16[8,128,128], index: 1, kind: input, shape index: {}]
  %s2 = inlined_call_operand.hbm [shape: f32[8,1,128], index: 2, kind: input, shape index: {}]
  %s3 = inlined_call_operand.hbm [shape: f32[8,8,128], index: 3, kind: output, shape index: {}]
  %s4 = sld [smem:[#allocation0]]
  $region34: #{tpu_custom_call.1} parent=0
    _
  %s6 = ssub.s32 1, %s4
  %s7 = scalar_select 0, %s6, %s4
  $region1: #{tpu_custom_call.1} parent=0
    #allocation2 [shape = 'u8[4096]{0}', space=vmem, size = 0x1000, scoped, tag = 'input window, operand 0, single buffered']
    #allocation3 [shape = 's32[1]{0}', space=sflag, size = 0x4, scoped, tag = 'scoped memory for tpu_custom_call.1']
    #allocation4 [shape = 's32[1]{0}', space=sflag, size = 0x4, scoped, tag = 'scoped memory for tpu_custom_call.1']
    #allocation5 [shape = 'u8[262144]{0}', space=vmem, size = 0x40000, scoped, tag = 'input window, operand 1, single buffered']
    #allocation6 [shape = 's32[1]{0}', space=sflag, size = 0x4, scoped, tag = 'scoped memory for tpu_custom_call.1']
    #allocation7 [shape = 'u8[4096]{0}', space=vmem, size = 0x1000, scoped, tag = 'input window, operand 2, single buffered']
    #allocation8 [shape = 'u8[32768]{0}', space=vmem, size = 0x8000, scoped, tag = 'output window, operand 0, single buffered']
    %8 = vsyncpa [#allocation3], 0
    %9 = vsyncpa [#allocation6], 0
    %10 = vsyncpa [#allocation4], 0
    // Predicated region
    $region2: #{tpu_custom_call.1} parent=1 // pred_check
      _
    $region3: #{tpu_custom_call.1} parent=1 // pred_check_branch
      %12 = sbr.rel (0) target = $region5
    $region4: #{tpu_custom_call.1} parent=1 // pred_region
      %s14 = ssub.s32 128, 128
      %15 = vsyncadd [#allocation3], %s14
      %s17 = sshll.u32 [#allocation2], 4
      %s18 = int_to_ptr.vmem [resolvable:$true] %s17
      %20 = dma.hbm_to_vmem [thread:$0]  %s0, 128, %s18, [#allocation3]
    $region5: #{tpu_custom_call.1} parent=1 // pred_fallthru
      _
    // Predicated region
    $region6: #{tpu_custom_call.1} parent=1 // pred_check
      _
    $region7: #{tpu_custom_call.1} parent=1 // pred_check_branch
      %22 = sbr.rel (0) target = $region9
    $region8: #{tpu_custom_call.1} parent=1 // pred_region
      %s24 = ssub.s32 8192, 8192
      %25 = vsyncadd [#allocation6], %s24
      %s26 = sshll.u32 [#allocation5], 4
      %s27 = int_to_ptr.vmem [resolvable:$true] %s26
      %32 = dma.hbm_to_vmem [thread:$0]  %s1, 8192, %s27, [#allocation6], 64, 64, 4
    $region9: #{tpu_custom_call.1} parent=1 // pred_fallthru
      _
    // Predicated region
    $region10: #{tpu_custom_call.1} parent=1 // pred_check
      _
    $region11: #{tpu_custom_call.1} parent=1 // pred_check_branch
      %34 = sbr.rel (0) target = $region13
    $region12: #{tpu_custom_call.1} parent=1 // pred_region
      %s36 = ssub.s32 128, 128
      %37 = vsyncadd [#allocation6], %s36
      %s38 = sshll.u32 [#allocation7], 4
      %s39 = int_to_ptr.vmem [resolvable:$true] %s38
      %44 = dma.hbm_to_vmem [thread:$0]  %s2, 128, %s39, [#allocation6], 16, 16, 1
    $region13: #{tpu_custom_call.1} parent=1 // pred_fallthru
      _
    // Predicated region
    $region14: #{tpu_custom_call.1} parent=1 // pred_check
      _
    $region15: #{tpu_custom_call.1} parent=1 // pred_check_branch
      %46 = sbr.rel (0) target = $region17
    $region16: #{tpu_custom_call.1} parent=1 // pred_region
      %47 = dma.done [#allocation3], 128
    $region17: #{tpu_custom_call.1} parent=1 // pred_fallthru
      _
    // Predicated region
    $region18: #{tpu_custom_call.1} parent=1 // pred_check
      _
    $region19: #{tpu_custom_call.1} parent=1 // pred_check_branch
      %49 = sbr.rel (0) target = $region21
    $region20: #{tpu_custom_call.1} parent=1 // pred_region
      %50 = dma.done [#allocation6], 8192
    $region21: #{tpu_custom_call.1} parent=1 // pred_fallthru
      _
    // Predicated region
    $region22: #{tpu_custom_call.1} parent=1 // pred_check
      _
    $region23: #{tpu_custom_call.1} parent=1 // pred_check_branch
      %52 = sbr.rel (0) target = $region25
    $region24: #{tpu_custom_call.1} parent=1 // pred_region
      %53 = dma.done [#allocation6], 128
    $region25: #{tpu_custom_call.1} parent=1 // pred_fallthru
      _
    %v55 = vld [vmem:[#allocation2] sm:$0xff]
    %v56 = vmul.f32 %v55, %v55
    %57 = vadd.xlane.f32.xlu0 %v56
    %v58 = vpop.xlane.xlu0 %57
    %v59 = vrcp.pop 128.0
    %v60 = vmul.f32 %v58, %v59
    %v61 = vadd.f32 %v60, 1e-08
    %v62 = vrsqrt.pop %v61
    %v63 = vmul.f32 %v55, %v62
    %v64 = vpack.c.bf16 %v63, %v63
    %v65 = vld [vmem:[#allocation5] sm:$0xf]
    %v66 = vld [vmem:[#allocation5 + $0x4] sm:$0xf]
    %v67 = vld [vmem:[#allocation5 + $0x8] sm:$0xf]
    %v68 = vld [vmem:[#allocation5 + $0xc] sm:$0xf]
    %v69 = vld [vmem:[#allocation5 + $0x10] sm:$0xf]
    %v70 = vld [vmem:[#allocation5 + $0x14] sm:$0xf]
    %v71 = vld [vmem:[#allocation5 + $0x18] sm:$0xf]
    %v72 = vld [vmem:[#allocation5 + $0x1c] sm:$0xf]
    %v73 = vld [vmem:[#allocation5 + $0x20] sm:$0xf]
    %v74 = vld [vmem:[#allocation5 + $0x24] sm:$0xf]
    %v75 = vld [vmem:[#allocation5 + $0x28] sm:$0xf]
    %v76 = vld [vmem:[#allocation5 + $0x2c] sm:$0xf]
    %v77 = vld [vmem:[#allocation5 + $0x30] sm:$0xf]
    %v78 = vld [vmem:[#allocation5 + $0x34] sm:$0xf]
    %v79 = vld [vmem:[#allocation5 + $0x38] sm:$0xf]
    %v80 = vld [vmem:[#allocation5 + $0x3c] sm:$0xf]
    %v81 = vld [vmem:[#allocation7] sm:$0x1]
    %v83 = vlaneseq
    %v84 = vshrl.u32 %v83, 7
    %v85 = vsub.s32 0, %v84
    %v86 = vrot.slane %v81, %v85
    %v104 = vunpack.c.l.b16 %v65
    %v105 = vunpack.c.l.b16 %v66
    %v106 = vunpack.c.l.b16 %v67
    %v107 = vunpack.c.l.b16 %v68
    %v108 = vunpack.c.l.b16 %v69
    %v109 = vunpack.c.l.b16 %v70
    %v110 = vunpack.c.l.b16 %v71
    %v111 = vunpack.c.l.b16 %v72
    %v112 = vunpack.c.l.b16 %v73
    %v113 = vunpack.c.l.b16 %v74
    %v114 = vunpack.c.l.b16 %v75
    %v115 = vunpack.c.l.b16 %v76
    %v116 = vunpack.c.l.b16 %v77
    %v117 = vunpack.c.l.b16 %v78
    %v118 = vunpack.c.l.b16 %v79
    %v119 = vunpack.c.l.b16 %v80
    %v120 = vpack.c.b16 %v105, %v104
    %v121 = vpack.c.b16 %v107, %v106
    %v122 = vpack.c.b16 %v109, %v108
    %v123 = vpack.c.b16 %v111, %v110
    %v124 = vpack.c.b16 %v113, %v112
    %v125 = vpack.c.b16 %v115, %v114
    %v126 = vpack.c.b16 %v117, %v116
    %v127 = vpack.c.b16 %v119, %v118
    %136 = vmatprep.subr.bf16.mxu0 0
    %137 = vmatpush1.bf16.msra.mxu0 %v120
    %138 = vmatprep.subr.bf16.mxu0 0
    %139 = vmatpush1.bf16.msra.mxu0 %v121
    %140 = vmatprep.subr.bf16.mxu0 0
    %141 = vmatpush1.bf16.msra.mxu0 %v122
    %142 = vmatprep.subr.bf16.mxu0 0
    %143 = vmatpush1.bf16.msra.mxu0 %v123
    %144 = vmatprep.subr.bf16.mxu0 0
    %145 = vmatpush1.bf16.msra.mxu0 %v124
    %146 = vmatprep.subr.bf16.mxu0 0
    %147 = vmatpush1.bf16.msra.mxu0 %v125
    %148 = vmatprep.subr.bf16.mxu0 0
    %149 = vmatpush1.bf16.msra.mxu0 %v126
    %150 = vmatprep.subr.bf16.mxu0 0
    %151 = vmatpush1.bf16.msra.mxu0 %v127
    %152 = vmatprep.subr.bf16.mxu0 0
    %153 = vmatpush1.bf16.msra.mxu0 0
    %154 = vmatprep.subr.bf16.mxu0 0
    %155 = vmatpush1.bf16.msra.mxu0 0
    %156 = vmatprep.subr.bf16.mxu0 0
    %157 = vmatpush1.bf16.msra.mxu0 0
    %158 = vmatprep.subr.bf16.mxu0 0
    %159 = vmatpush1.bf16.msra.mxu0 0
    %160 = vmatprep.subr.bf16.mxu0 0
    %161 = vmatpush1.bf16.msra.mxu0 0
    %162 = vmatprep.subr.bf16.mxu0 0
    %163 = vmatpush1.bf16.msra.mxu0 0
    %164 = vmatprep.subr.bf16.mxu0 0
    %165 = vmatpush1.bf16.msra.mxu0 0
    %166 = vmatprep.subr.bf16.mxu0 0
    %167 = vmatpush1.bf16.msra.mxu0 0
    %168 = vmatprep.mubr.bf16.mxu0 0
    %169 = vmatmul.mubr.bf16.gmra.mrb[0].mxu0 %v64
    %v170 = vpop.f32.mrb[0].mxu0
    %v171 = vadd.f32 %v86, %v170
    %v172 = vpop.f32.mrb[0].mxu0
    %v173 = vpop.f32.mrb[0].mxu0
    %v174 = vpop.f32.mrb[0].mxu0
    %175 = vdwg.mxu0
    %v176 = vmul.f32 %v171, 0.2
    %v177 = vmax.f32 %v171, %v176
    %v178 = vpack.c.bf16 %v177, %v177
    %s179 = scalar_lea.vmem [#allocation5], 64
    %v180 = vld [vmem:[%s179] sm:$0xf]
    %v181 = vld [vmem:[%s179 + $0x4] sm:$0xf]
    %v182 = vld [vmem:[%s179 + $0x8] sm:$0xf]
    %v183 = vld [vmem:[%s179 + $0xc] sm:$0xf]
    %v184 = vld [vmem:[%s179 + $0x10] sm:$0xf]
    %v185 = vld [vmem:[%s179 + $0x14] sm:$0xf]
    %v186 = vld [vmem:[%s179 + $0x18] sm:$0xf]
    %v187 = vld [vmem:[%s179 + $0x1c] sm:$0xf]
    %v188 = vld [vmem:[%s179 + $0x20] sm:$0xf]
    %v189 = vld [vmem:[%s179 + $0x24] sm:$0xf]
    %v190 = vld [vmem:[%s179 + $0x28] sm:$0xf]
    %v191 = vld [vmem:[%s179 + $0x2c] sm:$0xf]
    %v192 = vld [vmem:[%s179 + $0x30] sm:$0xf]
    %v193 = vld [vmem:[%s179 + $0x34] sm:$0xf]
    %v194 = vld [vmem:[%s179 + $0x38] sm:$0xf]
    %v195 = vld [vmem:[%s179 + $0x3c] sm:$0xf]
    %s196 = scalar_lea.vmem [#allocation7], 1
    %v197 = vld [vmem:[%s196] sm:$0x1]
    %v199 = vlaneseq
    %v200 = vshrl.u32 %v199, 7
    %v201 = vsub.s32 0, %v200
    %v202 = vrot.slane %v197, %v201
    %v220 = vunpack.c.l.b16 %v180
    %v221 = vunpack.c.l.b16 %v181
    %v222 = vunpack.c.l.b16 %v182
    %v223 = vunpack.c.l.b16 %v183
    %v224 = vunpack.c.l.b16 %v184
    %v225 = vunpack.c.l.b16 %v185
    %v226 = vunpack.c.l.b16 %v186
    %v227 = vunpack.c.l.b16 %v187
    %v228 = vunpack.c.l.b16 %v188
    %v229 = vunpack.c.l.b16 %v189
    %v230 = vunpack.c.l.b16 %v190
    %v231 = vunpack.c.l.b16 %v191
    %v232 = vunpack.c.l.b16 %v192
    %v233 = vunpack.c.l.b16 %v193
    %v234 = vunpack.c.l.b16 %v194
    %v235 = vunpack.c.l.b16 %v195
    %v236 = vpack.c.b16 %v221, %v220
    %v237 = vpack.c.b16 %v223, %v222
    %v238 = vpack.c.b16 %v225, %v224
    %v239 = vpack.c.b16 %v227, %v226
    %v240 = vpack.c.b16 %v229, %v228
    %v241 = vpack.c.b16 %v231, %v230
    %v242 = vpack.c.b16 %v233, %v232
    %v243 = vpack.c.b16 %v235, %v234
    %252 = vmatprep.subr.bf16.mxu0 0
    %253 = vmatpush1.bf16.msra.mxu0 %v236
    %254 = vmatprep.subr.bf16.mxu0 0
    %255 = vmatpush1.bf16.msra.mxu0 %v237
    %256 = vmatprep.subr.bf16.mxu0 0
    %257 = vmatpush1.bf16.msra.mxu0 %v238
    %258 = vmatprep.subr.bf16.mxu0 0
    %259 = vmatpush1.bf16.msra.mxu0 %v239
    %260 = vmatprep.subr.bf16.mxu0 0
    %261 = vmatpush1.bf16.msra.mxu0 %v240
    %262 = vmatprep.subr.bf16.mxu0 0
    %263 = vmatpush1.bf16.msra.mxu0 %v241
    %264 = vmatprep.subr.bf16.mxu0 0
    %265 = vmatpush1.bf16.msra.mxu0 %v242
    %266 = vmatprep.subr.bf16.mxu0 0
    %267 = vmatpush1.bf16.msra.mxu0 %v243
    %268 = vmatprep.subr.bf16.mxu0 0
    %269 = vmatpush1.bf16.msra.mxu0 0
    %270 = vmatprep.subr.bf16.mxu0 0
    %271 = vmatpush1.bf16.msra.mxu0 0
    %272 = vmatprep.subr.bf16.mxu0 0
    %273 = vmatpush1.bf16.msra.mxu0 0
    %274 = vmatprep.subr.bf16.mxu0 0
    %275 = vmatpush1.bf16.msra.mxu0 0
    %276 = vmatprep.subr.bf16.mxu0 0
    %277 = vmatpush1.bf16.msra.mxu0 0
    %278 = vmatprep.subr.bf16.mxu0 0
    %279 = vmatpush1.bf16.msra.mxu0 0
    %280 = vmatprep.subr.bf16.mxu0 0
    %281 = vmatpush1.bf16.msra.mxu0 0
    %282 = vmatprep.subr.bf16.mxu0 0
    %283 = vmatpush1.bf16.msra.mxu0 0
    %284 = vmatprep.mubr.bf16.mxu0 0
    %285 = vmatmul.mubr.bf16.gmra.mrb[0].mxu0 %v178
    %v286 = vpop.f32.mrb[0].mxu0
    %v287 = vadd.f32 %v202, %v286
    %v288 = vpop.f32.mrb[0].mxu0
    %v289 = vpop.f32.mrb[0].mxu0
    %v290 = vpop.f32.mrb[0].mxu0
    %291 = vdwg.mxu0
    %v292 = vmul.f32 %v287, 0.2
    %v293 = vmax.f32 %v287, %v292
    %v294 = vpack.c.bf16 %v293, %v293
    %s295 = scalar_lea.vmem [#allocation5], 128
    %v296 = vld [vmem:[%s295] sm:$0xf]
    %v297 = vld [vmem:[%s295 + $0x4] sm:$0xf]
    %v298 = vld [vmem:[%s295 + $0x8] sm:$0xf]
    %v299 = vld [vmem:[%s295 + $0xc] sm:$0xf]
    %v300 = vld [vmem:[%s295 + $0x10] sm:$0xf]
    %v301 = vld [vmem:[%s295 + $0x14] sm:$0xf]
    %v302 = vld [vmem:[%s295 + $0x18] sm:$0xf]
    %v303 = vld [vmem:[%s295 + $0x1c] sm:$0xf]
    %v304 = vld [vmem:[%s295 + $0x20] sm:$0xf]
    %v305 = vld [vmem:[%s295 + $0x24] sm:$0xf]
    %v306 = vld [vmem:[%s295 + $0x28] sm:$0xf]
    %v307 = vld [vmem:[%s295 + $0x2c] sm:$0xf]
    %v308 = vld [vmem:[%s295 + $0x30] sm:$0xf]
    %v309 = vld [vmem:[%s295 + $0x34] sm:$0xf]
    %v310 = vld [vmem:[%s295 + $0x38] sm:$0xf]
    %v311 = vld [vmem:[%s295 + $0x3c] sm:$0xf]
    %s312 = scalar_lea.vmem [#allocation7], 2
    %v313 = vld [vmem:[%s312] sm:$0x1]
    %v315 = vlaneseq
    %v316 = vshrl.u32 %v315, 7
    %v317 = vsub.s32 0, %v316
    %v318 = vrot.slane %v313, %v317
    %v336 = vunpack.c.l.b16 %v296
    %v337 = vunpack.c.l.b16 %v297
    %v338 = vunpack.c.l.b16 %v298
    %v339 = vunpack.c.l.b16 %v299
    %v340 = vunpack.c.l.b16 %v300
    %v341 = vunpack.c.l.b16 %v301
    %v342 = vunpack.c.l.b16 %v302
    %v343 = vunpack.c.l.b16 %v303
    %v344 = vunpack.c.l.b16 %v304
    %v345 = vunpack.c.l.b16 %v305
    %v346 = vunpack.c.l.b16 %v306
    %v347 = vunpack.c.l.b16 %v307
    %v348 = vunpack.c.l.b16 %v308
    %v349 = vunpack.c.l.b16 %v309
    %v350 = vunpack.c.l.b16 %v310
    %v351 = vunpack.c.l.b16 %v311
    %v352 = vpack.c.b16 %v337, %v336
    %v353 = vpack.c.b16 %v339, %v338
    %v354 = vpack.c.b16 %v341, %v340
    %v355 = vpack.c.b16 %v343, %v342
    %v356 = vpack.c.b16 %v345, %v344
    %v357 = vpack.c.b16 %v347, %v346
    %v358 = vpack.c.b16 %v349, %v348
    %v359 = vpack.c.b16 %v351, %v350
    %368 = vmatprep.subr.bf16.mxu0 0
    %369 = vmatpush1.bf16.msra.mxu0 %v352
    %370 = vmatprep.subr.bf16.mxu0 0
    %371 = vmatpush1.bf16.msra.mxu0 %v353
    %372 = vmatprep.subr.bf16.mxu0 0
    %373 = vmatpush1.bf16.msra.mxu0 %v354
    %374 = vmatprep.subr.bf16.mxu0 0
    %375 = vmatpush1.bf16.msra.mxu0 %v355
    %376 = vmatprep.subr.bf16.mxu0 0
    %377 = vmatpush1.bf16.msra.mxu0 %v356
    %378 = vmatprep.subr.bf16.mxu0 0
    %379 = vmatpush1.bf16.msra.mxu0 %v357
    %380 = vmatprep.subr.bf16.mxu0 0
    %381 = vmatpush1.bf16.msra.mxu0 %v358
    %382 = vmatprep.subr.bf16.mxu0 0
    %383 = vmatpush1.bf16.msra.mxu0 %v359
    %384 = vmatprep.subr.bf16.mxu0 0
    %385 = vmatpush1.bf16.msra.mxu0 0
    %386 = vmatprep.subr.bf16.mxu0 0
    %387 = vmatpush1.bf16.msra.mxu0 0
    %388 = vmatprep.subr.bf16.mxu0 0
    %389 = vmatpush1.bf16.msra.mxu0 0
    %390 = vmatprep.subr.bf16.mxu0 0
    %391 = vmatpush1.bf16.msra.mxu0 0
    %392 = vmatprep.subr.bf16.mxu0 0
    %393 = vmatpush1.bf16.msra.mxu0 0
    %394 = vmatprep.subr.bf16.mxu0 0
    %395 = vmatpush1.bf16.msra.mxu0 0
    %396 = vmatprep.subr.bf16.mxu0 0
    %397 = vmatpush1.bf16.msra.mxu0 0
    %398 = vmatprep.subr.bf16.mxu0 0
    %399 = vmatpush1.bf16.msra.mxu0 0
    %400 = vmatprep.mubr.bf16.mxu0 0
    %401 = vmatmul.mubr.bf16.gmra.mrb[0].mxu0 %v294
    %v402 = vpop.f32.mrb[0].mxu0
    %v403 = vadd.f32 %v318, %v402
    %v404 = vpop.f32.mrb[0].mxu0
    %v405 = vpop.f32.mrb[0].mxu0
    %v406 = vpop.f32.mrb[0].mxu0
    %407 = vdwg.mxu0
    %v408 = vmul.f32 %v403, 0.2
    %v409 = vmax.f32 %v403, %v408
    %v410 = vpack.c.bf16 %v409, %v409
    %s411 = scalar_lea.vmem [#allocation5], 192
    %v412 = vld [vmem:[%s411] sm:$0xf]
    %v413 = vld [vmem:[%s411 + $0x4] sm:$0xf]
    %v414 = vld [vmem:[%s411 + $0x8] sm:$0xf]
    %v415 = vld [vmem:[%s411 + $0xc] sm:$0xf]
    %v416 = vld [vmem:[%s411 + $0x10] sm:$0xf]
    %v417 = vld [vmem:[%s411 + $0x14] sm:$0xf]
    %v418 = vld [vmem:[%s411 + $0x18] sm:$0xf]
    %v419 = vld [vmem:[%s411 + $0x1c] sm:$0xf]
    %v420 = vld [vmem:[%s411 + $0x20] sm:$0xf]
    %v421 = vld [vmem:[%s411 + $0x24] sm:$0xf]
    %v422 = vld [vmem:[%s411 + $0x28] sm:$0xf]
    %v423 = vld [vmem:[%s411 + $0x2c] sm:$0xf]
    %v424 = vld [vmem:[%s411 + $0x30] sm:$0xf]
    %v425 = vld [vmem:[%s411 + $0x34] sm:$0xf]
    %v426 = vld [vmem:[%s411 + $0x38] sm:$0xf]
    %v427 = vld [vmem:[%s411 + $0x3c] sm:$0xf]
    %s428 = scalar_lea.vmem [#allocation7], 3
    %v429 = vld [vmem:[%s428] sm:$0x1]
    %v431 = vlaneseq
    %v432 = vshrl.u32 %v431, 7
    %v433 = vsub.s32 0, %v432
    %v434 = vrot.slane %v429, %v433
    %v452 = vunpack.c.l.b16 %v412
    %v453 = vunpack.c.l.b16 %v413
    %v454 = vunpack.c.l.b16 %v414
    %v455 = vunpack.c.l.b16 %v415
    %v456 = vunpack.c.l.b16 %v416
    %v457 = vunpack.c.l.b16 %v417
    %v458 = vunpack.c.l.b16 %v418
    %v459 = vunpack.c.l.b16 %v419
    %v460 = vunpack.c.l.b16 %v420
    %v461 = vunpack.c.l.b16 %v421
    %v462 = vunpack.c.l.b16 %v422
    %v463 = vunpack.c.l.b16 %v423
    %v464 = vunpack.c.l.b16 %v424
    %v465 = vunpack.c.l.b16 %v425
    %v466 = vunpack.c.l.b16 %v426
    %v467 = vunpack.c.l.b16 %v427
    %v468 = vpack.c.b16 %v453, %v452
    %v469 = vpack.c.b16 %v455, %v454
    %v470 = vpack.c.b16 %v457, %v456
    %v471 = vpack.c.b16 %v459, %v458
    %v472 = vpack.c.b16 %v461, %v460
    %v473 = vpack.c.b16 %v463, %v462
    %v474 = vpack.c.b16 %v465, %v464
    %v475 = vpack.c.b16 %v467, %v466
    %484 = vmatprep.subr.bf16.mxu0 0
    %485 = vmatpush1.bf16.msra.mxu0 %v468
    %486 = vmatprep.subr.bf16.mxu0 0
    %487 = vmatpush1.bf16.msra.mxu0 %v469
    %488 = vmatprep.subr.bf16.mxu0 0
    %489 = vmatpush1.bf16.msra.mxu0 %v470
    %490 = vmatprep.subr.bf16.mxu0 0
    %491 = vmatpush1.bf16.msra.mxu0 %v471
    %492 = vmatprep.subr.bf16.mxu0 0
    %493 = vmatpush1.bf16.msra.mxu0 %v472
    %494 = vmatprep.subr.bf16.mxu0 0
    %495 = vmatpush1.bf16.msra.mxu0 %v473
    %496 = vmatprep.subr.bf16.mxu0 0
    %497 = vmatpush1.bf16.msra.mxu0 %v474
    %498 = vmatprep.subr.bf16.mxu0 0
    %499 = vmatpush1.bf16.msra.mxu0 %v475
    %500 = vmatprep.subr.bf16.mxu0 0
    %501 = vmatpush1.bf16.msra.mxu0 0
    %502 = vmatprep.subr.bf16.mxu0 0
    %503 = vmatpush1.bf16.msra.mxu0 0
    %504 = vmatprep.subr.bf16.mxu0 0
    %505 = vmatpush1.bf16.msra.mxu0 0
    %506 = vmatprep.subr.bf16.mxu0 0
    %507 = vmatpush1.bf16.msra.mxu0 0
    %508 = vmatprep.subr.bf16.mxu0 0
    %509 = vmatpush1.bf16.msra.mxu0 0
    %510 = vmatprep.subr.bf16.mxu0 0
    %511 = vmatpush1.bf16.msra.mxu0 0
    %512 = vmatprep.subr.bf16.mxu0 0
    %513 = vmatpush1.bf16.msra.mxu0 0
    %514 = vmatprep.subr.bf16.mxu0 0
    %515 = vmatpush1.bf16.msra.mxu0 0
    %516 = vmatprep.mubr.bf16.mxu0 0
    %517 = vmatmul.mubr.bf16.gmra.mrb[0].mxu0 %v410
    %v518 = vpop.f32.mrb[0].mxu0
    %v519 = vadd.f32 %v434, %v518
    %v520 = vpop.f32.mrb[0].mxu0
    %v521 = vpop.f32.mrb[0].mxu0
    %v522 = vpop.f32.mrb[0].mxu0
    %523 = vdwg.mxu0
    %v524 = vmul.f32 %v519, 0.2
    %v525 = vmax.f32 %v519, %v524
    %v526 = vpack.c.bf16 %v525, %v525
    %s527 = scalar_lea.vmem [#allocation5], 256
    %v528 = vld [vmem:[%s527] sm:$0xf]
    %v529 = vld [vmem:[%s527 + $0x4] sm:$0xf]
    %v530 = vld [vmem:[%s527 + $0x8] sm:$0xf]
    %v531 = vld [vmem:[%s527 + $0xc] sm:$0xf]
    %v532 = vld [vmem:[%s527 + $0x10] sm:$0xf]
    %v533 = vld [vmem:[%s527 + $0x14] sm:$0xf]
    %v534 = vld [vmem:[%s527 + $0x18] sm:$0xf]
    %v535 = vld [vmem:[%s527 + $0x1c] sm:$0xf]
    %v536 = vld [vmem:[%s527 + $0x20] sm:$0xf]
    %v537 = vld [vmem:[%s527 + $0x24] sm:$0xf]
    %v538 = vld [vmem:[%s527 + $0x28] sm:$0xf]
    %v539 = vld [vmem:[%s527 + $0x2c] sm:$0xf]
    %v540 = vld [vmem:[%s527 + $0x30] sm:$0xf]
    %v541 = vld [vmem:[%s527 + $0x34] sm:$0xf]
    %v542 = vld [vmem:[%s527 + $0x38] sm:$0xf]
    %v543 = vld [vmem:[%s527 + $0x3c] sm:$0xf]
    %s544 = scalar_lea.vmem [#allocation7], 4
    %v545 = vld [vmem:[%s544] sm:$0x1]
    %v547 = vlaneseq
    %v548 = vshrl.u32 %v547, 7
    %v549 = vsub.s32 0, %v548
    %v550 = vrot.slane %v545, %v549
    %v568 = vunpack.c.l.b16 %v528
    %v569 = vunpack.c.l.b16 %v529
    %v570 = vunpack.c.l.b16 %v530
    %v571 = vunpack.c.l.b16 %v531
    %v572 = vunpack.c.l.b16 %v532
    %v573 = vunpack.c.l.b16 %v533
    %v574 = vunpack.c.l.b16 %v534
    %v575 = vunpack.c.l.b16 %v535
    %v576 = vunpack.c.l.b16 %v536
    %v577 = vunpack.c.l.b16 %v537
    %v578 = vunpack.c.l.b16 %v538
    %v579 = vunpack.c.l.b16 %v539
    %v580 = vunpack.c.l.b16 %v540
    %v581 = vunpack.c.l.b16 %v541
    %v582 = vunpack.c.l.b16 %v542
    %v583 = vunpack.c.l.b16 %v543
    %v584 = vpack.c.b16 %v569, %v568
    %v585 = vpack.c.b16 %v571, %v570
    %v586 = vpack.c.b16 %v573, %v572
    %v587 = vpack.c.b16 %v575, %v574
    %v588 = vpack.c.b16 %v577, %v576
    %v589 = vpack.c.b16 %v579, %v578
    %v590 = vpack.c.b16 %v581, %v580
    %v591 = vpack.c.b16 %v583, %v582
    %600 = vmatprep.subr.bf16.mxu0 0
    %601 = vmatpush1.bf16.msra.mxu0 %v584
    %602 = vmatprep.subr.bf16.mxu0 0
    %603 = vmatpush1.bf16.msra.mxu0 %v585
    %604 = vmatprep.subr.bf16.mxu0 0
    %605 = vmatpush1.bf16.msra.mxu0 %v586
    %606 = vmatprep.subr.bf16.mxu0 0
    %607 = vmatpush1.bf16.msra.mxu0 %v587
    %608 = vmatprep.subr.bf16.mxu0 0
    %609 = vmatpush1.bf16.msra.mxu0 %v588
    %610 = vmatprep.subr.bf16.mxu0 0
    %611 = vmatpush1.bf16.msra.mxu0 %v589
    %612 = vmatprep.subr.bf16.mxu0 0
    %613 = vmatpush1.bf16.msra.mxu0 %v590
    %614 = vmatprep.subr.bf16.mxu0 0
    %615 = vmatpush1.bf16.msra.mxu0 %v591
    %616 = vmatprep.subr.bf16.mxu0 0
    %617 = vmatpush1.bf16.msra.mxu0 0
    %618 = vmatprep.subr.bf16.mxu0 0
    %619 = vmatpush1.bf16.msra.mxu0 0
    %620 = vmatprep.subr.bf16.mxu0 0
    %621 = vmatpush1.bf16.msra.mxu0 0
    %622 = vmatprep.subr.bf16.mxu0 0
    %623 = vmatpush1.bf16.msra.mxu0 0
    %624 = vmatprep.subr.bf16.mxu0 0
    %625 = vmatpush1.bf16.msra.mxu0 0
    %626 = vmatprep.subr.bf16.mxu0 0
    %627 = vmatpush1.bf16.msra.mxu0 0
    %628 = vmatprep.subr.bf16.mxu0 0
    %629 = vmatpush1.bf16.msra.mxu0 0
    %630 = vmatprep.subr.bf16.mxu0 0
    %631 = vmatpush1.bf16.msra.mxu0 0
    %632 = vmatprep.mubr.bf16.mxu0 0
    %633 = vmatmul.mubr.bf16.gmra.mrb[0].mxu0 %v526
    %v634 = vpop.f32.mrb[0].mxu0
    %v635 = vadd.f32 %v550, %v634
    %v636 = vpop.f32.mrb[0].mxu0
    %v637 = vpop.f32.mrb[0].mxu0
    %v638 = vpop.f32.mrb[0].mxu0
    %639 = vdwg.mxu0
    %v640 = vmul.f32 %v635, 0.2
    %v641 = vmax.f32 %v635, %v640
    %v642 = vpack.c.bf16 %v641, %v641
    %s643 = scalar_lea.vmem [#allocation5], 320
    %v644 = vld [vmem:[%s643] sm:$0xf]
    %v645 = vld [vmem:[%s643 + $0x4] sm:$0xf]
    %v646 = vld [vmem:[%s643 + $0x8] sm:$0xf]
    %v647 = vld [vmem:[%s643 + $0xc] sm:$0xf]
    %v648 = vld [vmem:[%s643 + $0x10] sm:$0xf]
    %v649 = vld [vmem:[%s643 + $0x14] sm:$0xf]
    %v650 = vld [vmem:[%s643 + $0x18] sm:$0xf]
    %v651 = vld [vmem:[%s643 + $0x1c] sm:$0xf]
    %v652 = vld [vmem:[%s643 + $0x20] sm:$0xf]
    %v653 = vld [vmem:[%s643 + $0x24] sm:$0xf]
    %v654 = vld [vmem:[%s643 + $0x28] sm:$0xf]
    %v655 = vld [vmem:[%s643 + $0x2c] sm:$0xf]
    %v656 = vld [vmem:[%s643 + $0x30] sm:$0xf]
    %v657 = vld [vmem:[%s643 + $0x34] sm:$0xf]
    %v658 = vld [vmem:[%s643 + $0x38] sm:$0xf]
    %v659 = vld [vmem:[%s643 + $0x3c] sm:$0xf]
    %s660 = scalar_lea.vmem [#allocation7], 5
    %v661 = vld [vmem:[%s660] sm:$0x1]
    %v663 = vlaneseq
    %v664 = vshrl.u32 %v663, 7
    %v665 = vsub.s32 0, %v664
    %v666 = vrot.slane %v661, %v665
    %v684 = vunpack.c.l.b16 %v644
    %v685 = vunpack.c.l.b16 %v645
    %v686 = vunpack.c.l.b16 %v646
    %v687 = vunpack.c.l.b16 %v647
    %v688 = vunpack.c.l.b16 %v648
    %v689 = vunpack.c.l.b16 %v649
    %v690 = vunpack.c.l.b16 %v650
    %v691 = vunpack.c.l.b16 %v651
    %v692 = vunpack.c.l.b16 %v652
    %v693 = vunpack.c.l.b16 %v653
    %v694 = vunpack.c.l.b16 %v654
    %v695 = vunpack.c.l.b16 %v655
    %v696 = vunpack.c.l.b16 %v656
    %v697 = vunpack.c.l.b16 %v657
    %v698 = vunpack.c.l.b16 %v658
    %v699 = vunpack.c.l.b16 %v659
    %v700 = vpack.c.b16 %v685, %v684
    %v701 = vpack.c.b16 %v687, %v686
    %v702 = vpack.c.b16 %v689, %v688
    %v703 = vpack.c.b16 %v691, %v690
    %v704 = vpack.c.b16 %v693, %v692
    %v705 = vpack.c.b16 %v695, %v694
    %v706 = vpack.c.b16 %v697, %v696
    %v707 = vpack.c.b16 %v699, %v698
    %716 = vmatprep.subr.bf16.mxu0 0
    %717 = vmatpush1.bf16.msra.mxu0 %v700
    %718 = vmatprep.subr.bf16.mxu0 0
    %719 = vmatpush1.bf16.msra.mxu0 %v701
    %720 = vmatprep.subr.bf16.mxu0 0
    %721 = vmatpush1.bf16.msra.mxu0 %v702
    %722 = vmatprep.subr.bf16.mxu0 0
    %723 = vmatpush1.bf16.msra.mxu0 %v703
    %724 = vmatprep.subr.bf16.mxu0 0
    %725 = vmatpush1.bf16.msra.mxu0 %v704
    %726 = vmatprep.subr.bf16.mxu0 0
    %727 = vmatpush1.bf16.msra.mxu0 %v705
    %728 = vmatprep.subr.bf16.mxu0 0
    %729 = vmatpush1.bf16.msra.mxu0 %v706
    %730 = vmatprep.subr.bf16.mxu0 0
    %731 = vmatpush1.bf16.msra.mxu0 %v707
    %732 = vmatprep.subr.bf16.mxu0 0
    %733 = vmatpush1.bf16.msra.mxu0 0
    %734 = vmatprep.subr.bf16.mxu0 0
    %735 = vmatpush1.bf16.msra.mxu0 0
    %736 = vmatprep.subr.bf16.mxu0 0
    %737 = vmatpush1.bf16.msra.mxu0 0
    %738 = vmatprep.subr.bf16.mxu0 0
    %739 = vmatpush1.bf16.msra.mxu0 0
    %740 = vmatprep.subr.bf16.mxu0 0
    %741 = vmatpush1.bf16.msra.mxu0 0
    %742 = vmatprep.subr.bf16.mxu0 0
    %743 = vmatpush1.bf16.msra.mxu0 0
    %744 = vmatprep.subr.bf16.mxu0 0
    %745 = vmatpush1.bf16.msra.mxu0 0
    %746 = vmatprep.subr.bf16.mxu0 0
    %747 = vmatpush1.bf16.msra.mxu0 0
    %748 = vmatprep.mubr.bf16.mxu0 0
    %749 = vmatmul.mubr.bf16.gmra.mrb[0].mxu0 %v642
    %v750 = vpop.f32.mrb[0].mxu0
    %v751 = vadd.f32 %v666, %v750
    %v752 = vpop.f32.mrb[0].mxu0
    %v753 = vpop.f32.mrb[0].mxu0
    %v754 = vpop.f32.mrb[0].mxu0
    %755 = vdwg.mxu0
    %v756 = vmul.f32 %v751, 0.2
    %v757 = vmax.f32 %v751, %v756
    %v758 = vpack.c.bf16 %v757, %v757
    %s759 = scalar_lea.vmem [#allocation5], 384
    %v760 = vld [vmem:[%s759] sm:$0xf]
    %v761 = vld [vmem:[%s759 + $0x4] sm:$0xf]
    %v762 = vld [vmem:[%s759 + $0x8] sm:$0xf]
    %v763 = vld [vmem:[%s759 + $0xc] sm:$0xf]
    %v764 = vld [vmem:[%s759 + $0x10] sm:$0xf]
    %v765 = vld [vmem:[%s759 + $0x14] sm:$0xf]
    %v766 = vld [vmem:[%s759 + $0x18] sm:$0xf]
    %v767 = vld [vmem:[%s759 + $0x1c] sm:$0xf]
    %v768 = vld [vmem:[%s759 + $0x20] sm:$0xf]
    %v769 = vld [vmem:[%s759 + $0x24] sm:$0xf]
    %v770 = vld [vmem:[%s759 + $0x28] sm:$0xf]
    %v771 = vld [vmem:[%s759 + $0x2c] sm:$0xf]
    %v772 = vld [vmem:[%s759 + $0x30] sm:$0xf]
    %v773 = vld [vmem:[%s759 + $0x34] sm:$0xf]
    %v774 = vld [vmem:[%s759 + $0x38] sm:$0xf]
    %v775 = vld [vmem:[%s759 + $0x3c] sm:$0xf]
    %s776 = scalar_lea.vmem [#allocation7], 6
    %v777 = vld [vmem:[%s776] sm:$0x1]
    %v779 = vlaneseq
    %v780 = vshrl.u32 %v779, 7
    %v781 = vsub.s32 0, %v780
    %v782 = vrot.slane %v777, %v781
    %v800 = vunpack.c.l.b16 %v760
    %v801 = vunpack.c.l.b16 %v761
    %v802 = vunpack.c.l.b16 %v762
    %v803 = vunpack.c.l.b16 %v763
    %v804 = vunpack.c.l.b16 %v764
    %v805 = vunpack.c.l.b16 %v765
    %v806 = vunpack.c.l.b16 %v766
    %v807 = vunpack.c.l.b16 %v767
    %v808 = vunpack.c.l.b16 %v768
    %v809 = vunpack.c.l.b16 %v769
    %v810 = vunpack.c.l.b16 %v770
    %v811 = vunpack.c.l.b16 %v771
    %v812 = vunpack.c.l.b16 %v772
    %v813 = vunpack.c.l.b16 %v773
    %v814 = vunpack.c.l.b16 %v774
    %v815 = vunpack.c.l.b16 %v775
    %v816 = vpack.c.b16 %v801, %v800
    %v817 = vpack.c.b16 %v803, %v802
    %v818 = vpack.c.b16 %v805, %v804
    %v819 = vpack.c.b16 %v807, %v806
    %v820 = vpack.c.b16 %v809, %v808
    %v821 = vpack.c.b16 %v811, %v810
    %v822 = vpack.c.b16 %v813, %v812
    %v823 = vpack.c.b16 %v815, %v814
    %832 = vmatprep.subr.bf16.mxu0 0
    %833 = vmatpush1.bf16.msra.mxu0 %v816
    %834 = vmatprep.subr.bf16.mxu0 0
    %835 = vmatpush1.bf16.msra.mxu0 %v817
    %836 = vmatprep.subr.bf16.mxu0 0
    %837 = vmatpush1.bf16.msra.mxu0 %v818
    %838 = vmatprep.subr.bf16.mxu0 0
    %839 = vmatpush1.bf16.msra.mxu0 %v819
    %840 = vmatprep.subr.bf16.mxu0 0
    %841 = vmatpush1.bf16.msra.mxu0 %v820
    %842 = vmatprep.subr.bf16.mxu0 0
    %843 = vmatpush1.bf16.msra.mxu0 %v821
    %844 = vmatprep.subr.bf16.mxu0 0
    %845 = vmatpush1.bf16.msra.mxu0 %v822
    %846 = vmatprep.subr.bf16.mxu0 0
    %847 = vmatpush1.bf16.msra.mxu0 %v823
    %848 = vmatprep.subr.bf16.mxu0 0
    %849 = vmatpush1.bf16.msra.mxu0 0
    %850 = vmatprep.subr.bf16.mxu0 0
    %851 = vmatpush1.bf16.msra.mxu0 0
    %852 = vmatprep.subr.bf16.mxu0 0
    %853 = vmatpush1.bf16.msra.mxu0 0
    %854 = vmatprep.subr.bf16.mxu0 0
    %855 = vmatpush1.bf16.msra.mxu0 0
    %856 = vmatprep.subr.bf16.mxu0 0
    %857 = vmatpush1.bf16.msra.mxu0 0
    %858 = vmatprep.subr.bf16.mxu0 0
    %859 = vmatpush1.bf16.msra.mxu0 0
    %860 = vmatprep.subr.bf16.mxu0 0
    %861 = vmatpush1.bf16.msra.mxu0 0
    %862 = vmatprep.subr.bf16.mxu0 0
    %863 = vmatpush1.bf16.msra.mxu0 0
    %864 = vmatprep.mubr.bf16.mxu0 0
    %865 = vmatmul.mubr.bf16.gmra.mrb[0].mxu0 %v758
    %v866 = vpop.f32.mrb[0].mxu0
    %v867 = vadd.f32 %v782, %v866
    %v868 = vpop.f32.mrb[0].mxu0
    %v869 = vpop.f32.mrb[0].mxu0
    %v870 = vpop.f32.mrb[0].mxu0
    %871 = vdwg.mxu0
    %v872 = vmul.f32 %v867, 0.2
    %v873 = vmax.f32 %v867, %v872
    %v874 = vpack.c.bf16 %v873, %v873
    %s875 = scalar_lea.vmem [#allocation5], 448
    %v876 = vld [vmem:[%s875] sm:$0xf]
    %v877 = vld [vmem:[%s875 + $0x4] sm:$0xf]
    %v878 = vld [vmem:[%s875 + $0x8] sm:$0xf]
    %v879 = vld [vmem:[%s875 + $0xc] sm:$0xf]
    %v880 = vld [vmem:[%s875 + $0x10] sm:$0xf]
    %v881 = vld [vmem:[%s875 + $0x14] sm:$0xf]
    %v882 = vld [vmem:[%s875 + $0x18] sm:$0xf]
    %v883 = vld [vmem:[%s875 + $0x1c] sm:$0xf]
    %v884 = vld [vmem:[%s875 + $0x20] sm:$0xf]
    %v885 = vld [vmem:[%s875 + $0x24] sm:$0xf]
    %v886 = vld [vmem:[%s875 + $0x28] sm:$0xf]
    %v887 = vld [vmem:[%s875 + $0x2c] sm:$0xf]
    %v888 = vld [vmem:[%s875 + $0x30] sm:$0xf]
    %v889 = vld [vmem:[%s875 + $0x34] sm:$0xf]
    %v890 = vld [vmem:[%s875 + $0x38] sm:$0xf]
    %v891 = vld [vmem:[%s875 + $0x3c] sm:$0xf]
    %s892 = scalar_lea.vmem [#allocation7], 7
    %v893 = vld [vmem:[%s892] sm:$0x1]
    %v895 = vlaneseq
    %v896 = vshrl.u32 %v895, 7
    %v897 = vsub.s32 0, %v896
    %v898 = vrot.slane %v893, %v897
    %v916 = vunpack.c.l.b16 %v876
    %v917 = vunpack.c.l.b16 %v877
    %v918 = vunpack.c.l.b16 %v878
    %v919 = vunpack.c.l.b16 %v879
    %v920 = vunpack.c.l.b16 %v880
    %v921 = vunpack.c.l.b16 %v881
    %v922 = vunpack.c.l.b16 %v882
    %v923 = vunpack.c.l.b16 %v883
    %v924 = vunpack.c.l.b16 %v884
    %v925 = vunpack.c.l.b16 %v885
    %v926 = vunpack.c.l.b16 %v886
    %v927 = vunpack.c.l.b16 %v887
    %v928 = vunpack.c.l.b16 %v888
    %v929 = vunpack.c.l.b16 %v889
    %v930 = vunpack.c.l.b16 %v890
    %v931 = vunpack.c.l.b16 %v891
    %v932 = vpack.c.b16 %v917, %v916
    %v933 = vpack.c.b16 %v919, %v918
    %v934 = vpack.c.b16 %v921, %v920
    %v935 = vpack.c.b16 %v923, %v922
    %v936 = vpack.c.b16 %v925, %v924
    %v937 = vpack.c.b16 %v927, %v926
    %v938 = vpack.c.b16 %v929, %v928
    %v939 = vpack.c.b16 %v931, %v930
    %948 = vmatprep.subr.bf16.mxu0 0
    %949 = vmatpush1.bf16.msra.mxu0 %v932
    %950 = vmatprep.subr.bf16.mxu0 0
    %951 = vmatpush1.bf16.msra.mxu0 %v933
    %952 = vmatprep.subr.bf16.mxu0 0
    %953 = vmatpush1.bf16.msra.mxu0 %v934
    %954 = vmatprep.subr.bf16.mxu0 0
    %955 = vmatpush1.bf16.msra.mxu0 %v935
    %956 = vmatprep.subr.bf16.mxu0 0
    %957 = vmatpush1.bf16.msra.mxu0 %v936
    %958 = vmatprep.subr.bf16.mxu0 0
    %959 = vmatpush1.bf16.msra.mxu0 %v937
    %960 = vmatprep.subr.bf16.mxu0 0
    %961 = vmatpush1.bf16.msra.mxu0 %v938
    %962 = vmatprep.subr.bf16.mxu0 0
    %963 = vmatpush1.bf16.msra.mxu0 %v939
    %964 = vmatprep.subr.bf16.mxu0 0
    %965 = vmatpush1.bf16.msra.mxu0 0
    %966 = vmatprep.subr.bf16.mxu0 0
    %967 = vmatpush1.bf16.msra.mxu0 0
    %968 = vmatprep.subr.bf16.mxu0 0
    %969 = vmatpush1.bf16.msra.mxu0 0
    %970 = vmatprep.subr.bf16.mxu0 0
    %971 = vmatpush1.bf16.msra.mxu0 0
    %972 = vmatprep.subr.bf16.mxu0 0
    %973 = vmatpush1.bf16.msra.mxu0 0
    %974 = vmatprep.subr.bf16.mxu0 0
    %975 = vmatpush1.bf16.msra.mxu0 0
    %976 = vmatprep.subr.bf16.mxu0 0
    %977 = vmatpush1.bf16.msra.mxu0 0
    %978 = vmatprep.subr.bf16.mxu0 0
    %979 = vmatpush1.bf16.msra.mxu0 0
    %980 = vmatprep.mubr.bf16.mxu0 0
    %981 = vmatmul.mubr.bf16.gmra.mrb[0].mxu0 %v874
    %v982 = vpop.f32.mrb[0].mxu0
    %v983 = vadd.f32 %v898, %v982
    %v984 = vpop.f32.mrb[0].mxu0
    %v985 = vpop.f32.mrb[0].mxu0
    %v986 = vpop.f32.mrb[0].mxu0
    %987 = vdwg.mxu0
    %v988 = vmul.f32 %v983, 0.2
    %v989 = vmax.f32 %v983, %v988
    %v991 = vcombine.high %v989, %v989
    %v993 = vunpack.c.l.s4 1966171168
    %v994 = vunpack.c.0.s8 %v993
    %v995 = vlaneseq
    %v996 = vshrl.u32 %v995, 7
    %v997 = vsub.s32 %v994, %v996
    %v998 = vrot.slane %v989, %v997
    %v1000 = vunpack.c.l.s4 1966171168
    %v1001 = vunpack.c.0.s8 %v1000
    %v1002 = vlaneseq
    %v1003 = vshrl.u32 %v1002, 7
    %v1004 = vsub.s32 %v1001, %v1003
    %v1005 = vrot.slane %v991, %v1004
    %v1006 = vcombine.high %v998, %v998
    %v1007 = vcombine.high %v1005, %v1005
    %v1009 = vunpack.c.l.s4 1966171168
    %v1010 = vunpack.c.0.s8 %v1009
    %v1011 = vlaneseq
    %v1012 = vshrl.u32 %v1011, 7
    %v1013 = vsub.s32 %v1010, %v1012
    %v1014 = vrot.slane %v998, %v1013
    %v1016 = vunpack.c.l.s4 1966171168
    %v1017 = vunpack.c.0.s8 %v1016
    %v1018 = vlaneseq
    %v1019 = vshrl.u32 %v1018, 7
    %v1020 = vsub.s32 %v1017, %v1019
    %v1021 = vrot.slane %v1005, %v1020
    %v1023 = vunpack.c.l.s4 1966171168
    %v1024 = vunpack.c.0.s8 %v1023
    %v1025 = vlaneseq
    %v1026 = vshrl.u32 %v1025, 7
    %v1027 = vsub.s32 %v1024, %v1026
    %v1028 = vrot.slane %v1006, %v1027
    %v1030 = vunpack.c.l.s4 1966171168
    %v1031 = vunpack.c.0.s8 %v1030
    %v1032 = vlaneseq
    %v1033 = vshrl.u32 %v1032, 7
    %v1034 = vsub.s32 %v1031, %v1033
    %v1035 = vrot.slane %v1007, %v1034
    %v1036 = vcombine.high %v1014, %v1014
    %v1037 = vcombine.high %v1021, %v1021
    %v1038 = vcombine.high %v1028, %v1028
    %v1039 = vcombine.high %v1035, %v1035
    %1048 = vst [vmem:[#allocation8] sm:$0x1] %v1014
    %1049 = vst [vmem:[#allocation8 + $0x8] sm:$0x1] %v1028
    %1050 = vst [vmem:[#allocation8 + $0x10] sm:$0x1] %v1036
    %1051 = vst [vmem:[#allocation8 + $0x18] sm:$0x1] %v1038
    %1052 = vst [vmem:[#allocation8 + $0x20] sm:$0x1] %v1021
    %1053 = vst [vmem:[#allocation8 + $0x28] sm:$0x1] %v1035
    %1054 = vst [vmem:[#allocation8 + $0x30] sm:$0x1] %v1037
    %1055 = vst [vmem:[#allocation8 + $0x38] sm:$0x1] %v1039
    %1056 = vst [vmem:[#allocation8 + $0x1] sm:$0x1] %v1014
    %1057 = vst [vmem:[#allocation8 + $0x9] sm:$0x1] %v1028
    %1058 = vst [vmem:[#allocation8 + $0x11] sm:$0x1] %v1036
    %1059 = vst [vmem:[#allocation8 + $0x19] sm:$0x1] %v1038
    %1060 = vst [vmem:[#allocation8 + $0x21] sm:$0x1] %v1021
    %1061 = vst [vmem:[#allocation8 + $0x29] sm:$0x1] %v1035
    %1062 = vst [vmem:[#allocation8 + $0x31] sm:$0x1] %v1037
    %1063 = vst [vmem:[#allocation8 + $0x39] sm:$0x1] %v1039
    %1064 = vst [vmem:[#allocation8 + $0x2] sm:$0x1] %v1014
    %1065 = vst [vmem:[#allocation8 + $0xa] sm:$0x1] %v1028
    %1066 = vst [vmem:[#allocation8 + $0x12] sm:$0x1] %v1036
    %1067 = vst [vmem:[#allocation8 + $0x1a] sm:$0x1] %v1038
    %1068 = vst [vmem:[#allocation8 + $0x22] sm:$0x1] %v1021
    %1069 = vst [vmem:[#allocation8 + $0x2a] sm:$0x1] %v1035
    %1070 = vst [vmem:[#allocation8 + $0x32] sm:$0x1] %v1037
    %1071 = vst [vmem:[#allocation8 + $0x3a] sm:$0x1] %v1039
    %1072 = vst [vmem:[#allocation8 + $0x3] sm:$0x1] %v1014
    %1073 = vst [vmem:[#allocation8 + $0xb] sm:$0x1] %v1028
    %1074 = vst [vmem:[#allocation8 + $0x13] sm:$0x1] %v1036
    %1075 = vst [vmem:[#allocation8 + $0x1b] sm:$0x1] %v1038
    %1076 = vst [vmem:[#allocation8 + $0x23] sm:$0x1] %v1021
    %1077 = vst [vmem:[#allocation8 + $0x2b] sm:$0x1] %v1035
    %1078 = vst [vmem:[#allocation8 + $0x33] sm:$0x1] %v1037
    %1079 = vst [vmem:[#allocation8 + $0x3b] sm:$0x1] %v1039
    %1080 = vst [vmem:[#allocation8 + $0x4] sm:$0x1] %v1014
    %1081 = vst [vmem:[#allocation8 + $0xc] sm:$0x1] %v1028
    %1082 = vst [vmem:[#allocation8 + $0x14] sm:$0x1] %v1036
    %1083 = vst [vmem:[#allocation8 + $0x1c] sm:$0x1] %v1038
    %1084 = vst [vmem:[#allocation8 + $0x24] sm:$0x1] %v1021
    %1085 = vst [vmem:[#allocation8 + $0x2c] sm:$0x1] %v1035
    %1086 = vst [vmem:[#allocation8 + $0x34] sm:$0x1] %v1037
    %1087 = vst [vmem:[#allocation8 + $0x3c] sm:$0x1] %v1039
    %1088 = vst [vmem:[#allocation8 + $0x5] sm:$0x1] %v1014
    %1089 = vst [vmem:[#allocation8 + $0xd] sm:$0x1] %v1028
    %1090 = vst [vmem:[#allocation8 + $0x15] sm:$0x1] %v1036
    %1091 = vst [vmem:[#allocation8 + $0x1d] sm:$0x1] %v1038
    %1092 = vst [vmem:[#allocation8 + $0x25] sm:$0x1] %v1021
    %1093 = vst [vmem:[#allocation8 + $0x2d] sm:$0x1] %v1035
    %1094 = vst [vmem:[#allocation8 + $0x35] sm:$0x1] %v1037
    %1095 = vst [vmem:[#allocation8 + $0x3d] sm:$0x1] %v1039
    %1096 = vst [vmem:[#allocation8 + $0x6] sm:$0x1] %v1014
    %1097 = vst [vmem:[#allocation8 + $0xe] sm:$0x1] %v1028
    %1098 = vst [vmem:[#allocation8 + $0x16] sm:$0x1] %v1036
    %1099 = vst [vmem:[#allocation8 + $0x1e] sm:$0x1] %v1038
    %1100 = vst [vmem:[#allocation8 + $0x26] sm:$0x1] %v1021
    %1101 = vst [vmem:[#allocation8 + $0x2e] sm:$0x1] %v1035
    %1102 = vst [vmem:[#allocation8 + $0x36] sm:$0x1] %v1037
    %1103 = vst [vmem:[#allocation8 + $0x3e] sm:$0x1] %v1039
    %1104 = vst [vmem:[#allocation8 + $0x7] sm:$0x1] %v1014
    %1105 = vst [vmem:[#allocation8 + $0xf] sm:$0x1] %v1028
    %1106 = vst [vmem:[#allocation8 + $0x17] sm:$0x1] %v1036
    %1107 = vst [vmem:[#allocation8 + $0x1f] sm:$0x1] %v1038
    %1108 = vst [vmem:[#allocation8 + $0x27] sm:$0x1] %v1021
    %1109 = vst [vmem:[#allocation8 + $0x2f] sm:$0x1] %v1035
    %1110 = vst [vmem:[#allocation8 + $0x37] sm:$0x1] %v1037
    %1111 = vst [vmem:[#allocation8 + $0x3f] sm:$0x1] %v1039
    // Predicated region
    $region26: #{tpu_custom_call.1} parent=1 // pred_check
      _
    $region27: #{tpu_custom_call.1} parent=1 // pred_check_branch
      %1113 = sbr.rel (0) target = $region29
    $region28: #{tpu_custom_call.1} parent=1 // pred_region
      %s1115 = ssub.s32 1024, 1024
      %1116 = vsyncadd [#allocation4], %s1115
      %s1117 = sshll.u32 [#allocation8], 4
      %s1118 = int_to_ptr.vmem [resolvable:$true] %s1117
      %1123 = dma.vmem_to_hbm [thread:$0]  %s1118, 1024, %s3, [#allocation4], 128, 128, 8
    $region29: #{tpu_custom_call.1} parent=1 // pred_fallthru
      _
    // Predicated region
    $region30: #{tpu_custom_call.1} parent=1 // pred_check
      _
    $region31: #{tpu_custom_call.1} parent=1 // pred_check_branch
      %1125 = sbr.rel (0) target = $region33
    $region32: #{tpu_custom_call.1} parent=1 // pred_region
      %1126 = dma.done [#allocation4], 1024
    $region33: #{tpu_custom_call.1} parent=1 // pred_fallthru
      _
    %1127 = vsyncpa [#allocation3], 1
    %1128 = vsyncpa [#allocation6], 1
    %1129 = vsyncpa [#allocation4], 1

</llo_original>
